<compile_context>
chip_gen: v7x
topology: tpu7x:2x2x1
jax: 0.10.0
libtpu: 0.0.40
codegen_flags: <defaults>
</compile_context>

<pallas_src>
import jax
import jax.numpy as jnp
from jax.experimental import pallas as pl
from jax.experimental.pallas import tpu as pltpu


LANE = 128
_TARGET_STREAM_BYTES = 2 * 1024 * 1024          # aim for >= ~2 MiB streamed HBM bytes per grid step
_SINGLE_BUFFER_WEIGHT_THRESHOLD = 4 * 1024 * 1024  # below this, double-buffered weights are free
_FALLBACK_VMEM_LIMIT = 32 * 1024 * 1024
_MIN_TILES_BATCH = 4096                          # batches >= this keep >=2 tiles for v7x megacore


def _round_up(n, m):
    return ((n + m - 1) // m) * m


def _cdiv(a, b):
    return -(-a // b)


def _row_granularity(*dtypes):
    """Batch-tile granularity: native sublane tile is 8*(4//itemsize) rows."""
    g = 8
    for dt in dtypes:
        itemsize = jnp.dtype(dt).itemsize
        g = max(g, 8 * max(4 // itemsize, 1))
    return g


def _vmem_limit_bytes():
    """Generation-aware VMEM budget: ~3/4 of physical VMEM (96 MiB on v5e/v6e's
    128 MiB, 48 MiB on v7x's 64 MiB). Conservative fallback if the query fails."""
    try:
        phys = int(pltpu.get_tpu_info().vmem_capacity_bytes)
        return max(phys * 3 // 4, 16 * 1024 * 1024)
    except Exception:
        return _FALLBACK_VMEM_LIMIT


# ---------------------------------------------------------------------------
# Kernel
# ---------------------------------------------------------------------------
def _make_ffnn_kernel(num_layers, matmul_dtype, approx_sigmoid):
    """Fused N-layer MLP: ReLU hidden activations, Sigmoid output."""

    def kernel(*refs):
        x_ref, o_ref = refs[0], refs[-1]
        wb = refs[1:-1]

        # X.float() + MXU operand cast fused into one in-kernel VPU cast (no extra
        # HBM pass in the wrapper, no f32->bf16 double cast).
        h = x_ref[...].astype(matmul_dtype)
        for l in range(num_layers):
            w_ref, b_ref = wb[2 * l], wb[2 * l + 1]
            # matmul-dtype operands feed the MXU; accumulate / bias-add in f32.
            z = jnp.dot(h, w_ref[...], preferred_element_type=jnp.float32) + b_ref[...]
            if l < num_layers - 1:
                # inner_activation = ReLU; Dropout(p) is identity in eval / p=0.
                # Keep inter-layer activations in the matmul dtype (halves vreg/VMEM
                # pressure of the (tb, hidden) intermediates).
                h = jnp.maximum(z, 0.0).astype(matmul_dtype)
            else:
                # final_activation = Sigmoid: exp on the EUP; reciprocal goes to the
                # EUP too when approx=True (exact divide on the f32 path).
                o_ref[...] = pl.reciprocal(
                    1.0 + jnp.exp(-z), approx=approx_sigmoid).astype(o_ref.dtype)

    return kernel


# ---------------------------------------------------------------------------
# Parameter preparation (done once, outside the per-call wrapper)
# ---------------------------------------------------------------------------
def prepare_params(params, matmul_dtype=jnp.bfloat16, lane=LANE):
    """Zero-pad hidden feature dims up to a multiple of 128 lanes and cast weights to
    the matmul operand dtype (biases stay f32). Padded hidden units are exactly 0
    through the ReLU, so results are unchanged. The final layer is NOT padded (that
    would 4x the HBM writeback of a mem-bound kernel)."""
    prepared = []
    num_layers = len(params)
    prev_dim = params[0][0].shape[0]               # input dim kept as-is (full-dim block)
    for l, (w, b) in enumerate(params):
        fan_in, fan_out = w.shape
        out_pad = fan_out if l == num_layers - 1 else _round_up(fan_out, lane)
        wp = jnp.zeros((prev_dim, out_pad), matmul_dtype)
        wp = wp.at[:fan_in, :fan_out].set(w.astype(matmul_dtype))
        bp = jnp.zeros((1, out_pad), jnp.float32)
        bp = bp.at[:, :fan_out].set(b.reshape(1, -1).astype(jnp.float32))
        prepared.append((wp, bp))
        prev_dim = out_pad
    return prepared


# ---------------------------------------------------------------------------
# Batch-tile selection (bytes-based, VMEM-aware)
# ---------------------------------------------------------------------------
def _choose_batch_tile(batch, in_dim, layer_dims, x_itemsize, out_itemsize,
                       matmul_itemsize, wb_bytes, vmem_limit, weight_buffers, gran):
    out_dim = layer_dims[-1]
    # HBM bytes streamed per row (x tile in + out tile back).
    stream_row = in_dim * x_itemsize + out_dim * out_itemsize
    # VMEM bytes per row: double-buffered x/out tiles + in-flight activations
    # (f32 dot output + matmul-dtype cast per layer + casted layer-0 operand).
    vmem_row = (2 * in_dim * x_itemsize + 2 * out_dim * out_itemsize
                + in_dim * matmul_itemsize
                + sum(d * (4 + matmul_itemsize) for d in layer_dims))
    # Subtract the resident weight/bias footprint explicitly; leave headroom for
    # compiler temps.
    budget = vmem_limit - weight_buffers * wb_bytes - (4 << 20)
    budget = max(budget, vmem_limit // 8)
    tb_vmem_max = max((budget // vmem_row) // gran * gran, gran)

    # Bytes-targeted tile size, capped by VMEM and the batch itself.
    tb_target = _round_up(max(_cdiv(_TARGET_STREAM_BYTES, stream_row), gran), gran)
    tb_target = min(tb_target, tb_vmem_max, _round_up(batch, gran))

    # Keep >= 2 grid steps for big batches so v7x can shard across its 2 TCs
    # (neutral on single-TC v5e/v6e).
    min_tiles = 2 if batch >= _MIN_TILES_BATCH else 1
    num_tiles = max(_cdiv(batch, tb_target), min_tiles)

    # Spread rows evenly: bounds batch padding to < gran*num_tiles wasted rows
    # instead of padding up to a full tb_target tile.
    tb = min(_round_up(_cdiv(batch, num_tiles), gran), tb_vmem_max)
    return max(tb, gran)


# ---------------------------------------------------------------------------
# Wrapper
# ---------------------------------------------------------------------------
def ffnn_forward(x, prepared_params, *, matmul_dtype=jnp.bfloat16,
                 out_dtype=jnp.float32, block_batch=None, approx_sigmoid=None,
                 interpret=False):
    num_layers = len(prepared_params)
    in_dim = prepared_params[0][0].shape[0]
    layer_dims = [w.shape[1] for (w, _) in prepared_params]
    out_dim = layer_dims[-1]
    assert x.shape[1] == in_dim

    if approx_sigmoid is None:
        # EUP approx reciprocal on the low-precision fast path; exact divide for f32.
        approx_sigmoid = jnp.dtype(matmul_dtype) != jnp.dtype(jnp.float32)

    wb_bytes = sum(int(a.size) * jnp.dtype(a.dtype).itemsize
                   for wb in prepared_params for a in wb)
    single_buffer_weights = wb_bytes >= _SINGLE_BUFFER_WEIGHT_THRESHOLD
    weight_buffers = 1 if single_buffer_weights else 2
    vmem_limit = _vmem_limit_bytes()
    gran = _row_granularity(x.dtype, out_dtype)

    batch = x.shape[0]
    if block_batch is not None:
        tb = _round_up(block_batch, gran)
    else:
        tb = _choose_batch_tile(
            batch, in_dim, layer_dims,
            jnp.dtype(x.dtype).itemsize, jnp.dtype(out_dtype).itemsize,
            jnp.dtype(matmul_dtype).itemsize,
            wb_bytes, vmem_limit, weight_buffers, gran)

    num_tiles = _cdiv(batch, tb)
    padded_batch = num_tiles * tb
    if padded_batch != batch:
        # Bounded to < gran*num_tiles wasted rows by the tile chooser.
        x = jnp.pad(x, ((0, padded_batch - batch), (0, 0)))
    grid = (num_tiles,)

    # x / out are streamed per batch tile (auto double-buffered); weights & biases
    # keep a constant block index so Pallas DMAs them once and keeps them resident.
    x_spec = pl.BlockSpec((tb, in_dim), lambda i: (i, 0))
    out_spec = pl.BlockSpec((tb, out_dim), lambda i: (i, 0))

    def _resident_spec(shape):
        if single_buffer_weights:
            # Large weights: drop to a single pipeline buffer (never revisited with a
            # new index) to halve their resident VMEM footprint.
            try:
                return pl.BlockSpec(shape, lambda i: (0, 0),
                                    pipeline_mode=pl.Buffered(1))
            except Exception:
                pass
        return pl.BlockSpec(shape, lambda i: (0, 0))

    wb_specs = []
    for (w, b) in prepared_params:
        wb_specs.append(_resident_spec(w.shape))
        wb_specs.append(_resident_spec(b.shape))
    flat_wb = [a for wb in prepared_params for a in wb]

    # Advisory cost estimate for XLA's scheduler around the custom call.
    dims = [in_dim] + layer_dims
    flops = 2 * padded_batch * sum(k * n for k, n in zip(dims[:-1], dims[1:]))
    bytes_accessed = (padded_batch * in_dim * jnp.dtype(x.dtype).itemsize
                      + padded_batch * out_dim * jnp.dtype(out_dtype).itemsize
                      + wb_bytes)
    cost = pl.CostEstimate(flops=flops,
                           transcendentals=padded_batch * out_dim,
                           bytes_accessed=bytes_accessed)

    kernel = _make_ffnn_kernel(num_layers, matmul_dtype, approx_sigmoid)
    out = pl.pallas_call(
        kernel,
        out_shape=jax.ShapeDtypeStruct((padded_batch, out_dim), out_dtype),
        grid=grid,
        in_specs=[x_spec] + wb_specs,
        out_specs=out_spec,
        compiler_params=pltpu.CompilerParams(
            dimension_semantics=("parallel",),      # batch tiles shard across v7x's 2 TCs
            vmem_limit_bytes=vmem_limit,
        ),
        cost_estimate=cost,
        interpret=interpret,
    )(x, *flat_wb)

    return out[:batch] if padded_batch != batch else out


# ---------------------------------------------------------------------------
# Reference / init
# ---------------------------------------------------------------------------
def init_linear(key, fan_in, fan_out):
    """Deterministic init mimicking torch.nn.Linear: U(-1/sqrt(fan_in), 1/sqrt(fan_in))."""
    kw, kb = jax.random.split(key)
    bound = 1.0 / jnp.sqrt(jnp.float32(fan_in))
    # stored as (in, out) == PyTorch weight.T
    w = jax.random.uniform(kw, (fan_in, fan_out), jnp.float32, -bound, bound)
    b = jax.random.uniform(kb, (1, fan_out), jnp.float32, -bound, bound)
    return w, b


def reference_forward(x, params):
    h = x.astype(jnp.float32)
    n = len(params)
    for l, (w, b) in enumerate(params):
        h = h @ w + b
        if l < n - 1:
            h = jnp.maximum(h, 0.0)
    return jax.nn.sigmoid(h)


if __name__ == "__main__":
    # FFNN(input_size=32, hidden_sizes=[64, 48], output_size=8,
    #      inner_activation=ReLU, final_activation=Sigmoid, dropout=0)
    input_size, hidden_sizes, output_size = 32, [64, 48], 8

    key = jax.random.PRNGKey(0)
    kx, kxl, k1, k2, k3 = jax.random.split(key, 5)

    params = [
        init_linear(k1, input_size, hidden_sizes[0]),
        init_linear(k2, hidden_sizes[0], hidden_sizes[1]),
        init_linear(k3, hidden_sizes[1], output_size),
    ]

    # --- small batch (not a multiple of 8): exercises the batch-padding path ---
    batch = 10
    x = jax.random.normal(kx, (batch, input_size), jnp.float32)
    y_ref = reference_forward(x, params)

    # f32 matmul operands + exact sigmoid: tight check against the pure-f32 reference.
    p_f32 = prepare_params(params, matmul_dtype=jnp.float32)
    y_f32 = ffnn_forward(x, p_f32, matmul_dtype=jnp.float32)
    jax.block_until_ready(y_f32)
    assert y_f32.shape == (batch, output_size)
    assert jnp.allclose(y_f32, y_ref, atol=1e-5, rtol=1e-5), "f32 kernel mismatch"

    # bf16 fast path (bf16 x streamed from HBM, bf16 weights/activations, f32 accum):
    p_bf16 = prepare_params(params, matmul_dtype=jnp.bfloat16)
    y_bf16 = ffnn_forward(x.astype(jnp.bfloat16), p_bf16, matmul_dtype=jnp.bfloat16)
    jax.block_until_ready(y_bf16)
    assert y_bf16.shape == (batch, output_size)
    assert jnp.allclose(y_bf16, y_ref, atol=3e-2, rtol=3e-2), "bf16 kernel mismatch"

    # --- larger batch: exercises the multi-tile grid (>=2 tiles) + uneven split ---
    batch_l = 5000
    x_l = jax.random.normal(kxl, (batch_l, input_size), jnp.float32)
    y_ref_l = reference_forward(x_l, params)
    y_bf16_l = ffnn_forward(x_l.astype(jnp.bfloat16), p_bf16, matmul_dtype=jnp.bfloat16)
    jax.block_until_ready(y_bf16_l)
    assert y_bf16_l.shape == (batch_l, output_size)
    assert jnp.allclose(y_bf16_l, y_ref_l, atol=3e-2, rtol=3e-2), "bf16 large-batch mismatch"

    # TODO(synk): training-side machinery (optimizer / loss / lr scheduler / partial_fit)
    # and training-mode Dropout are host-side PyTorch logic with no Pallas equivalent;
    # only forward() (inference) with the ReLU/Sigmoid instantiation is implemented.
    print("KERNEL_OK")
</pallas_src>

<mosaic_0001>
module attributes {stable_mosaic.version = 11 : i64} {
  func.func @kernel(%arg0: i32, %arg1: memref<16x32xf32, #tpu.memory_space<vmem>>, %arg2: memref<32x128xf32, #tpu.memory_space<vmem>>, %arg3: memref<1x128xf32, #tpu.memory_space<vmem>>, %arg4: memref<128x128xf32, #tpu.memory_space<vmem>>, %arg5: memref<1x128xf32, #tpu.memory_space<vmem>>, %arg6: memref<128x8xf32, #tpu.memory_space<vmem>>, %arg7: memref<1x8xf32, #tpu.memory_space<vmem>>, %arg8: memref<16x8xf32, #tpu.memory_space<vmem>>) attributes {dimension_semantics = [#tpu.dimension_semantics<parallel>], iteration_bounds = array<i64: 1>, scalar_prefetch = 0 : i64, scratch_operands = 0 : i64, tpu.core_type = #tpu.core_type<tc>, window_params = [{transform_indices = @transform_0, window_bounds = array<i64: 16, 32>}, {pipeline_mode = #tpu.pipeline_mode<synchronous>, transform_indices = @transform_1, window_bounds = array<i64: 32, 128>}, {pipeline_mode = #tpu.pipeline_mode<synchronous>, transform_indices = @transform_2, window_bounds = array<i64: 1, 128>}, {pipeline_mode = #tpu.pipeline_mode<synchronous>, transform_indices = @transform_3, window_bounds = array<i64: 128, 128>}, {pipeline_mode = #tpu.pipeline_mode<synchronous>, transform_indices = @transform_4, window_bounds = array<i64: 1, 128>}, {pipeline_mode = #tpu.pipeline_mode<synchronous>, transform_indices = @transform_5, window_bounds = array<i64: 128, 8>}, {pipeline_mode = #tpu.pipeline_mode<synchronous>, transform_indices = @transform_6, window_bounds = array<i64: 1, 8>}, {transform_indices = @transform_7, window_bounds = array<i64: 16, 8>}]} {
    %c0 = arith.constant 0 : index
    %c0_0 = arith.constant 0 : index
    %0 = vector.load %arg1[%c0, %c0_0] : memref<16x32xf32, #tpu.memory_space<vmem>>, vector<16x32xf32>
    %c0_1 = arith.constant 0 : index
    %c0_2 = arith.constant 0 : index
    %1 = vector.load %arg2[%c0_1, %c0_2] : memref<32x128xf32, #tpu.memory_space<vmem>>, vector<32x128xf32>
    %cst = arith.constant dense<0.000000e+00> : vector<16x128xf32>
    %2 = tpu.matmul %0, %1, %cst {dimension_numbers = #tpu.dot_dimension_numbers<[1], [0], [0], [1], [0, 0, 1, 1], [], []>} : vector<16x32xf32>, vector<32x128xf32>, vector<16x128xf32> -> vector<16x128xf32>
    %c0_3 = arith.constant 0 : index
    %c0_4 = arith.constant 0 : index
    %3 = vector.load %arg3[%c0_3, %c0_4] : memref<1x128xf32, #tpu.memory_space<vmem>>, vector<1x128xf32>
    %4 = vector.broadcast %3 : vector<1x128xf32> to vector<16x128xf32>
    %5 = arith.addf %2, %4 : vector<16x128xf32>
    %cst_5 = arith.constant 0.000000e+00 : f32
    %6 = vector.broadcast %cst_5 : f32 to vector<16x128xf32>
    %7 = arith.maximumf %5, %6 : vector<16x128xf32>
    %c0_6 = arith.constant 0 : index
    %c0_7 = arith.constant 0 : index
    %8 = vector.load %arg4[%c0_6, %c0_7] : memref<128x128xf32, #tpu.memory_space<vmem>>, vector<128x128xf32>
    %cst_8 = arith.constant dense<0.000000e+00> : vector<16x128xf32>
    %9 = tpu.matmul %7, %8, %cst_8 {dimension_numbers = #tpu.dot_dimension_numbers<[1], [0], [0], [1], [0, 0, 1, 1], [], []>} : vector<16x128xf32>, vector<128x128xf32>, vector<16x128xf32> -> vector<16x128xf32>
    %c0_9 = arith.constant 0 : index
    %c0_10 = arith.constant 0 : index
    %10 = vector.load %arg5[%c0_9, %c0_10] : memref<1x128xf32, #tpu.memory_space<vmem>>, vector<1x128xf32>
    %11 = vector.broadcast %10 : vector<1x128xf32> to vector<16x128xf32>
    %12 = arith.addf %9, %11 : vector<16x128xf32>
    %cst_11 = arith.constant 0.000000e+00 : f32
    %13 = vector.broadcast %cst_11 : f32 to vector<16x128xf32>
    %14 = arith.maximumf %12, %13 : vector<16x128xf32>
    %c0_12 = arith.constant 0 : index
    %c0_13 = arith.constant 0 : index
    %15 = vector.load %arg6[%c0_12, %c0_13] : memref<128x8xf32, #tpu.memory_space<vmem>>, vector<128x8xf32>
    %cst_14 = arith.constant dense<0.000000e+00> : vector<16x8xf32>
    %16 = tpu.matmul %14, %15, %cst_14 {dimension_numbers = #tpu.dot_dimension_numbers<[1], [0], [0], [1], [0, 0, 1, 1], [], []>} : vector<16x128xf32>, vector<128x8xf32>, vector<16x8xf32> -> vector<16x8xf32>
    %c0_15 = arith.constant 0 : index
    %c0_16 = arith.constant 0 : index
    %17 = vector.load %arg7[%c0_15, %c0_16] : memref<1x8xf32, #tpu.memory_space<vmem>>, vector<1x8xf32>
    %18 = vector.broadcast %17 : vector<1x8xf32> to vector<16x8xf32>
    %19 = arith.addf %16, %18 : vector<16x8xf32>
    %cst_17 = arith.constant 0.000000e+00 : f32
    %20 = vector.broadcast %cst_17 : f32 to vector<16x8xf32>
    %21 = arith.subf %20, %19 : vector<16x8xf32>
    %22 = math.exp %21 : vector<16x8xf32>
    %cst_18 = arith.constant 1.000000e+00 : f32
    %23 = vector.broadcast %cst_18 : f32 to vector<16x8xf32>
    %24 = arith.addf %23, %22 : vector<16x8xf32>
    %25 = tpu.reciprocal %24 : vector<16x8xf32> -> vector<16x8xf32>
    %c0_19 = arith.constant 0 : index
    %c0_20 = arith.constant 0 : index
    %26 = vector.load %arg8[%c0_19, %c0_20] : memref<16x8xf32, #tpu.memory_space<vmem>>, vector<16x8xf32>
    tpu.vector_store %arg8[%c0_19, %c0_20], %25 {strides = array<i32>} : memref<16x8xf32, #tpu.memory_space<vmem>>, vector<16x8xf32>,
    return
  }
  func.func @transform_0(%arg0: i32) -> (i32, i32) {
    %c0_i32 = arith.constant 0 : i32
    %c0_i32_0 = arith.constant 0 : i32
    return %arg0, %c0_i32 : i32, i32
  }
  func.func @transform_1(%arg0: i32) -> (i32, i32) {
    %c0_i32 = arith.constant 0 : i32
    %c0_i32_0 = arith.constant 0 : i32
    %c0_i32_1 = arith.constant 0 : i32
    return %c0_i32, %c0_i32_0 : i32, i32
  }
  func.func @transform_2(%arg0: i32) -> (i32, i32) {
    %c0_i32 = arith.constant 0 : i32
    %c0_i32_0 = arith.constant 0 : i32
    %c0_i32_1 = arith.constant 0 : i32
    return %c0_i32, %c0_i32_0 : i32, i32
  }
  func.func @transform_3(%arg0: i32) -> (i32, i32) {
    %c0_i32 = arith.constant 0 : i32
    %c0_i32_0 = arith.constant 0 : i32
    %c0_i32_1 = arith.constant 0 : i32
    return %c0_i32, %c0_i32_0 : i32, i32
  }
  func.func @transform_4(%arg0: i32) -> (i32, i32) {
    %c0_i32 = arith.constant 0 : i32
    %c0_i32_0 = arith.constant 0 : i32
    %c0_i32_1 = arith.constant 0 : i32
    return %c0_i32, %c0_i32_0 : i32, i32
  }
  func.func @transform_5(%arg0: i32) -> (i32, i32) {
    %c0_i32 = arith.constant 0 : i32
    %c0_i32_0 = arith.constant 0 : i32
    %c0_i32_1 = arith.constant 0 : i32
    return %c0_i32, %c0_i32_0 : i32, i32
  }
  func.func @transform_6(%arg0: i32) -> (i32, i32) {
    %c0_i32 = arith.constant 0 : i32
    %c0_i32_0 = arith.constant 0 : i32
    %c0_i32_1 = arith.constant 0 : i32
    return %c0_i32, %c0_i32_0 : i32, i32
  }
  func.func @transform_7(%arg0: i32) -> (i32, i32) {
    %c0_i32 = arith.constant 0 : i32
    %c0_i32_0 = arith.constant 0 : i32
    return %arg0, %c0_i32 : i32, i32
  }
}

</mosaic_0001>

<llo_original>
// kernel: tpu_custom_call.1
$region0: #{tpu_custom_call.1}
  #allocation0 [shape = 'u32[]', space=smem, size = 0x4, offset = 0x4, fixed_abs, tag = 'smem constant byte address 0x4 - core index']
  #allocation1 [shape = 'u32[144,128]{1,0:T(1,128)}', space=vmem, size = 0x12000, scoped, tag = 'internal scratch']
  %s0 = inlined_call_operand.vmem [shape: f32[16,32], index: 0, kind: input, shape index: {}]
  %s1 = inlined_call_operand.hbm [shape: f32[32,128], index: 1, kind: input, shape index: {}]
  %s2 = inlined_call_operand.vmem [shape: f32[1,128], index: 2, kind: input, shape index: {}]
  %s3 = inlined_call_operand.vmem [shape: f32[128,128], index: 3, kind: input, shape index: {}]
  %s4 = inlined_call_operand.vmem [shape: f32[1,128], index: 4, kind: input, shape index: {}]
  %s5 = inlined_call_operand.vmem [shape: f32[128,8], index: 5, kind: input, shape index: {}]
  %s6 = inlined_call_operand.vmem [shape: f32[1,8], index: 6, kind: input, shape index: {}]
  %s7 = inlined_call_operand.vmem [shape: f32[16,8], index: 7, kind: output, shape index: {}]
  %s8 = sld [smem:[#allocation0]]
  $region42: #{tpu_custom_call.1} parent=0
    _
  %s10 = ssub.s32 1, %s8
  %s11 = scalar_select 0, %s10, %s8
  $region1: #{tpu_custom_call.1} parent=0
    #allocation2 [shape = 'u8[16384]{0}', space=vmem, size = 0x4000, scoped, tag = 'input window, operand 1, single buffered']
    #allocation3 [shape = 's32[1]{0}', space=sflag, size = 0x4, scoped, tag = 'scoped memory for tpu_custom_call.1']
    %12 = vsyncpa [#allocation3], 0
    // Predicated region
    $region2: #{tpu_custom_call.1} parent=1 // pred_check
      _
    $region3: #{tpu_custom_call.1} parent=1 // pred_check_branch
      %14 = sbr.rel (0) target = $region5
    $region4: #{tpu_custom_call.1} parent=1 // pred_region
      _
    $region5: #{tpu_custom_call.1} parent=1 // pred_fallthru
      _
    // Predicated region
    $region6: #{tpu_custom_call.1} parent=1 // pred_check
      _
    $region7: #{tpu_custom_call.1} parent=1 // pred_check_branch
      %16 = sbr.rel (0) target = $region9
    $region8: #{tpu_custom_call.1} parent=1 // pred_region
      %s18 = ssub.s32 512, 512
      %19 = vsyncadd [#allocation3], %s18
      %s20 = sshll.u32 [#allocation2], 4
      %s21 = int_to_ptr.vmem [resolvable:$true] %s20
      %26 = dma.hbm_to_vmem [thread:$0]  %s1, 512, %s21, [#allocation3], 128, 128, 8
    $region9: #{tpu_custom_call.1} parent=1 // pred_fallthru
      _
    // Predicated region
    $region10: #{tpu_custom_call.1} parent=1 // pred_check
      _
    $region11: #{tpu_custom_call.1} parent=1 // pred_check_branch
      %28 = sbr.rel (0) target = $region13
    $region12: #{tpu_custom_call.1} parent=1 // pred_region
      _
    $region13: #{tpu_custom_call.1} parent=1 // pred_fallthru
      _
    // Predicated region
    $region14: #{tpu_custom_call.1} parent=1 // pred_check
      _
    $region15: #{tpu_custom_call.1} parent=1 // pred_check_branch
      %30 = sbr.rel (0) target = $region17
    $region16: #{tpu_custom_call.1} parent=1 // pred_region
      _
    $region17: #{tpu_custom_call.1} parent=1 // pred_fallthru
      _
    // Predicated region
    $region18: #{tpu_custom_call.1} parent=1 // pred_check
      _
    $region19: #{tpu_custom_call.1} parent=1 // pred_check_branch
      %32 = sbr.rel (0) target = $region21
    $region20: #{tpu_custom_call.1} parent=1 // pred_region
      _
    $region21: #{tpu_custom_call.1} parent=1 // pred_fallthru
      _
    // Predicated region
    $region22: #{tpu_custom_call.1} parent=1 // pred_check
      _
    $region23: #{tpu_custom_call.1} parent=1 // pred_check_branch
      %34 = sbr.rel (0) target = $region25
    $region24: #{tpu_custom_call.1} parent=1 // pred_region
      _
    $region25: #{tpu_custom_call.1} parent=1 // pred_fallthru
      _
    // Predicated region
    $region26: #{tpu_custom_call.1} parent=1 // pred_check
      _
    $region27: #{tpu_custom_call.1} parent=1 // pred_check_branch
      %36 = sbr.rel (0) target = $region29
    $region28: #{tpu_custom_call.1} parent=1 // pred_region
      _
    $region29: #{tpu_custom_call.1} parent=1 // pred_fallthru
      _
    // Predicated region
    $region30: #{tpu_custom_call.1} parent=1 // pred_check
      _
    $region31: #{tpu_custom_call.1} parent=1 // pred_check_branch
      %38 = sbr.rel (0) target = $region33
    $region32: #{tpu_custom_call.1} parent=1 // pred_region
      %39 = dma.done [#allocation3], 512
    $region33: #{tpu_custom_call.1} parent=1 // pred_fallthru
      _
    %v40 = vld [vmem:[%s0] sm:$0xff]
    %v41 = vld [vmem:[%s0 + $0x8] sm:$0xff]
    %v42 = vld [vmem:[#allocation2] sm:$0xff]
    %v43 = vld [vmem:[#allocation2 + $0x8] sm:$0xff]
    %v44 = vld [vmem:[#allocation2 + $0x10] sm:$0xff]
    %v45 = vld [vmem:[#allocation2 + $0x18] sm:$0xff]
    %v46 = vld [vmem:[%s2] sm:$0x1]
    %v48 = vlaneseq
    %v49 = vshrl.u32 %v48, 7
    %v50 = vsub.s32 0, %v49
    %v51 = vrot.slane %v46, %v50
    %vm53 = vcmask 261120
    %v55 = vsel %vm53, %v40, 0
    %v58 = vsel %vm53, %v41, 0
    %60 = vmatprep.subr.mxu0 0.0
    %61 = vmatpush1.msra.mxu0 %v42
    %62 = vmatprep.subr.mxu0 0.0
    %63 = vmatpush1.msra.mxu0 %v43
    %64 = vmatprep.subr.mxu0 0.0
    %65 = vmatpush1.msra.mxu0 %v44
    %66 = vmatprep.subr.mxu0 0.0
    %67 = vmatpush1.msra.mxu0 %v45
    %68 = vmatprep.subr.mxu0 0.0
    %69 = vmatpush1.msra.mxu0 0.0
    %70 = vmatprep.subr.mxu0 0.0
    %71 = vmatpush1.msra.mxu0 0.0
    %72 = vmatprep.subr.mxu0 0.0
    %73 = vmatpush1.msra.mxu0 0.0
    %74 = vmatprep.subr.mxu0 0.0
    %75 = vmatpush1.msra.mxu0 0.0
    %76 = vmatprep.subr.mxu0 0.0
    %77 = vmatpush1.msra.mxu0 0.0
    %78 = vmatprep.subr.mxu0 0.0
    %79 = vmatpush1.msra.mxu0 0.0
    %80 = vmatprep.subr.mxu0 0.0
    %81 = vmatpush1.msra.mxu0 0.0
    %82 = vmatprep.subr.mxu0 0.0
    %83 = vmatpush1.msra.mxu0 0.0
    %84 = vmatprep.subr.mxu0 0.0
    %85 = vmatpush1.msra.mxu0 0.0
    %86 = vmatprep.subr.mxu0 0.0
    %87 = vmatpush1.msra.mxu0 0.0
    %88 = vmatprep.subr.mxu0 0.0
    %89 = vmatpush1.msra.mxu0 0.0
    %90 = vmatprep.subr.mxu0 0.0
    %91 = vmatpush1.msra.mxu0 0.0
    %92 = vmatprep.subr.mxu0 0.0
    %93 = vmatpush1.msra.mxu0 0.0
    %94 = vmatprep.subr.mxu0 0.0
    %95 = vmatpush1.msra.mxu0 0.0
    %96 = vmatprep.subr.mxu0 0.0
    %97 = vmatpush1.msra.mxu0 0.0
    %98 = vmatprep.subr.mxu0 0.0
    %99 = vmatpush1.msra.mxu0 0.0
    %100 = vmatprep.subr.mxu0 0.0
    %101 = vmatpush1.msra.mxu0 0.0
    %102 = vmatprep.subr.mxu0 0.0
    %103 = vmatpush1.msra.mxu0 0.0
    %104 = vmatprep.subr.mxu0 0.0
    %105 = vmatpush1.msra.mxu0 0.0
    %106 = vmatprep.subr.mxu0 0.0
    %107 = vmatpush1.msra.mxu0 0.0
    %108 = vmatprep.subr.mxu0 0.0
    %109 = vmatpush1.msra.mxu0 0.0
    %110 = vmatprep.subr.mxu0 0.0
    %111 = vmatpush1.msra.mxu0 0.0
    %112 = vmatprep.subr.mxu0 0.0
    %113 = vmatpush1.msra.mxu0 0.0
    %114 = vmatprep.subr.mxu0 0.0
    %115 = vmatpush1.msra.mxu0 0.0
    %116 = vmatprep.subr.mxu0 0.0
    %117 = vmatpush1.msra.mxu0 0.0
    %118 = vmatprep.subr.mxu0 0.0
    %119 = vmatpush1.msra.mxu0 0.0
    %120 = vmatprep.subr.mxu0 0.0
    %121 = vmatpush1.msra.mxu0 0.0
    %122 = vmatprep.subr.mxu0 0.0
    %123 = vmatpush1.msra.mxu0 0.0
    %124 = vmatprep.mubr.f32.mxu0 0.0
    %125 = vmatmul.mubr.f32.gmra.mrb[0].mxu0 %v55
    %v126 = vpop.f32.mrb[0].mxu0
    %v127 = vadd.f32 %v51, %v126
    %v128 = vpop.f32.mrb[0].mxu0
    %129 = vmatprep.mubr.f32.mxu0 0.0
    %130 = vmatmul.mubr.f32.gmra.mrb[0].mxu0 %v58
    %v131 = vpop.f32.mrb[0].mxu0
    %v132 = vadd.f32 %v51, %v131
    %v133 = vpop.f32.mrb[0].mxu0
    %134 = vdwg.mxu0
    %v135 = vmax.f32 %v127, 0.0
    %v136 = vmax.f32 %v132, 0.0
    %v137 = vld [vmem:[%s3] sm:$0xff]
    %v138 = vld [vmem:[%s3 + $0x8] sm:$0xff]
    %v139 = vld [vmem:[%s3 + $0x10] sm:$0xff]
    %v140 = vld [vmem:[%s3 + $0x18] sm:$0xff]
    %v141 = vld [vmem:[%s3 + $0x20] sm:$0xff]
    %v142 = vld [vmem:[%s3 + $0x28] sm:$0xff]
    %v143 = vld [vmem:[%s3 + $0x30] sm:$0xff]
    %v144 = vld [vmem:[%s3 + $0x38] sm:$0xff]
    %v145 = vld [vmem:[%s3 + $0x40] sm:$0xff]
    %v146 = vld [vmem:[%s3 + $0x48] sm:$0xff]
    %v147 = vld [vmem:[%s3 + $0x50] sm:$0xff]
    %v148 = vld [vmem:[%s3 + $0x58] sm:$0xff]
    %v149 = vld [vmem:[%s3 + $0x60] sm:$0xff]
    %v150 = vld [vmem:[%s3 + $0x68] sm:$0xff]
    %v151 = vld [vmem:[%s3 + $0x70] sm:$0xff]
    %v152 = vld [vmem:[%s3 + $0x78] sm:$0xff]
    %v153 = vld [vmem:[%s4] sm:$0x1]
    %v155 = vlaneseq
    %v156 = vshrl.u32 %v155, 7
    %v157 = vsub.s32 0, %v156
    %v158 = vrot.slane %v153, %v157
    %160 = vmatprep.subr.mxu0 0.0
    %161 = vmatpush1.msra.mxu0 %v137
    %162 = vmatprep.subr.mxu0 0.0
    %163 = vmatpush1.msra.mxu0 %v138
    %164 = vmatprep.subr.mxu0 0.0
    %165 = vmatpush1.msra.mxu0 %v139
    %166 = vmatprep.subr.mxu0 0.0
    %167 = vmatpush1.msra.mxu0 %v140
    %168 = vmatprep.subr.mxu0 0.0
    %169 = vmatpush1.msra.mxu0 %v141
    %170 = vmatprep.subr.mxu0 0.0
    %171 = vmatpush1.msra.mxu0 %v142
    %172 = vmatprep.subr.mxu0 0.0
    %173 = vmatpush1.msra.mxu0 %v143
    %174 = vmatprep.subr.mxu0 0.0
    %175 = vmatpush1.msra.mxu0 %v144
    %176 = vmatprep.subr.mxu0 0.0
    %177 = vmatpush1.msra.mxu0 %v145
    %178 = vmatprep.subr.mxu0 0.0
    %179 = vmatpush1.msra.mxu0 %v146
    %180 = vmatprep.subr.mxu0 0.0
    %181 = vmatpush1.msra.mxu0 %v147
    %182 = vmatprep.subr.mxu0 0.0
    %183 = vmatpush1.msra.mxu0 %v148
    %184 = vmatprep.subr.mxu0 0.0
    %185 = vmatpush1.msra.mxu0 %v149
    %186 = vmatprep.subr.mxu0 0.0
    %187 = vmatpush1.msra.mxu0 %v150
    %188 = vmatprep.subr.mxu0 0.0
    %189 = vmatpush1.msra.mxu0 %v151
    %190 = vmatprep.subr.mxu0 0.0
    %191 = vmatpush1.msra.mxu0 %v152
    %192 = vmatprep.subr.mxu0 0.0
    %193 = vmatpush1.msra.mxu0 0.0
    %194 = vmatprep.subr.mxu0 0.0
    %195 = vmatpush1.msra.mxu0 0.0
    %196 = vmatprep.subr.mxu0 0.0
    %197 = vmatpush1.msra.mxu0 0.0
    %198 = vmatprep.subr.mxu0 0.0
    %199 = vmatpush1.msra.mxu0 0.0
    %200 = vmatprep.subr.mxu0 0.0
    %201 = vmatpush1.msra.mxu0 0.0
    %202 = vmatprep.subr.mxu0 0.0
    %203 = vmatpush1.msra.mxu0 0.0
    %204 = vmatprep.subr.mxu0 0.0
    %205 = vmatpush1.msra.mxu0 0.0
    %206 = vmatprep.subr.mxu0 0.0
    %207 = vmatpush1.msra.mxu0 0.0
    %208 = vmatprep.subr.mxu0 0.0
    %209 = vmatpush1.msra.mxu0 0.0
    %210 = vmatprep.subr.mxu0 0.0
    %211 = vmatpush1.msra.mxu0 0.0
    %212 = vmatprep.subr.mxu0 0.0
    %213 = vmatpush1.msra.mxu0 0.0
    %214 = vmatprep.subr.mxu0 0.0
    %215 = vmatpush1.msra.mxu0 0.0
    %216 = vmatprep.subr.mxu0 0.0
    %217 = vmatpush1.msra.mxu0 0.0
    %218 = vmatprep.subr.mxu0 0.0
    %219 = vmatpush1.msra.mxu0 0.0
    %220 = vmatprep.subr.mxu0 0.0
    %221 = vmatpush1.msra.mxu0 0.0
    %222 = vmatprep.subr.mxu0 0.0
    %223 = vmatpush1.msra.mxu0 0.0
    %224 = vmatprep.mubr.f32.mxu0 0.0
    %225 = vmatmul.mubr.f32.gmra.mrb[0].mxu0 %v135
    %v226 = vpop.f32.mrb[0].mxu0
    %v227 = vadd.f32 %v158, %v226
    %v228 = vpop.f32.mrb[0].mxu0
    %229 = vmatprep.mubr.f32.mxu0 0.0
    %230 = vmatmul.mubr.f32.gmra.mrb[0].mxu0 %v136
    %v231 = vpop.f32.mrb[0].mxu0
    %v232 = vadd.f32 %v158, %v231
    %v233 = vpop.f32.mrb[0].mxu0
    %234 = vdwg.mxu0
    %v235 = vmax.f32 %v227, 0.0
    %v236 = vmax.f32 %v232, 0.0
    %v237 = vld [vmem:[%s5] sm:$0xff]
    %v238 = vld [vmem:[%s5 + $0x8] sm:$0xff]
    %v239 = vld [vmem:[%s5 + $0x10] sm:$0xff]
    %v240 = vld [vmem:[%s5 + $0x18] sm:$0xff]
    %v241 = vld [vmem:[%s5 + $0x20] sm:$0xff]
    %v242 = vld [vmem:[%s5 + $0x28] sm:$0xff]
    %v243 = vld [vmem:[%s5 + $0x30] sm:$0xff]
    %v244 = vld [vmem:[%s5 + $0x38] sm:$0xff]
    %v245 = vld [vmem:[%s5 + $0x40] sm:$0xff]
    %v246 = vld [vmem:[%s5 + $0x48] sm:$0xff]
    %v247 = vld [vmem:[%s5 + $0x50] sm:$0xff]
    %v248 = vld [vmem:[%s5 + $0x58] sm:$0xff]
    %v249 = vld [vmem:[%s5 + $0x60] sm:$0xff]
    %v250 = vld [vmem:[%s5 + $0x68] sm:$0xff]
    %v251 = vld [vmem:[%s5 + $0x70] sm:$0xff]
    %v252 = vld [vmem:[%s5 + $0x78] sm:$0xff]
    %v253 = vld [vmem:[%s6] sm:$0x1]
    %v255 = vlaneseq
    %v256 = vshrl.u32 %v255, 7
    %v257 = vsub.s32 0, %v256
    %v258 = vrot.slane %v253, %v257
    %260 = vmatprep.subr.mxu0 0.0
    %261 = vmatpush1.msra.mxu0 %v237
    %262 = vmatprep.subr.mxu0 0.0
    %263 = vmatpush1.msra.mxu0 %v238
    %264 = vmatprep.subr.mxu0 0.0
    %265 = vmatpush1.msra.mxu0 %v239
    %266 = vmatprep.subr.mxu0 0.0
    %267 = vmatpush1.msra.mxu0 %v240
    %268 = vmatprep.subr.mxu0 0.0
    %269 = vmatpush1.msra.mxu0 %v241
    %270 = vmatprep.subr.mxu0 0.0
    %271 = vmatpush1.msra.mxu0 %v242
    %272 = vmatprep.subr.mxu0 0.0
    %273 = vmatpush1.msra.mxu0 %v243
    %274 = vmatprep.subr.mxu0 0.0
    %275 = vmatpush1.msra.mxu0 %v244
    %276 = vmatprep.subr.mxu0 0.0
    %277 = vmatpush1.msra.mxu0 %v245
    %278 = vmatprep.subr.mxu0 0.0
    %279 = vmatpush1.msra.mxu0 %v246
    %280 = vmatprep.subr.mxu0 0.0
    %281 = vmatpush1.msra.mxu0 %v247
    %282 = vmatprep.subr.mxu0 0.0
    %283 = vmatpush1.msra.mxu0 %v248
    %284 = vmatprep.subr.mxu0 0.0
    %285 = vmatpush1.msra.mxu0 %v249
    %286 = vmatprep.subr.mxu0 0.0
    %287 = vmatpush1.msra.mxu0 %v250
    %288 = vmatprep.subr.mxu0 0.0
    %289 = vmatpush1.msra.mxu0 %v251
    %290 = vmatprep.subr.mxu0 0.0
    %291 = vmatpush1.msra.mxu0 %v252
    %292 = vmatprep.subr.mxu0 0.0
    %293 = vmatpush1.msra.mxu0 0.0
    %294 = vmatprep.subr.mxu0 0.0
    %295 = vmatpush1.msra.mxu0 0.0
    %296 = vmatprep.subr.mxu0 0.0
    %297 = vmatpush1.msra.mxu0 0.0
    %298 = vmatprep.subr.mxu0 0.0
    %299 = vmatpush1.msra.mxu0 0.0
    %300 = vmatprep.subr.mxu0 0.0
    %301 = vmatpush1.msra.mxu0 0.0
    %302 = vmatprep.subr.mxu0 0.0
    %303 = vmatpush1.msra.mxu0 0.0
    %304 = vmatprep.subr.mxu0 0.0
    %305 = vmatpush1.msra.mxu0 0.0
    %306 = vmatprep.subr.mxu0 0.0
    %307 = vmatpush1.msra.mxu0 0.0
    %308 = vmatprep.subr.mxu0 0.0
    %309 = vmatpush1.msra.mxu0 0.0
    %310 = vmatprep.subr.mxu0 0.0
    %311 = vmatpush1.msra.mxu0 0.0
    %312 = vmatprep.subr.mxu0 0.0
    %313 = vmatpush1.msra.mxu0 0.0
    %314 = vmatprep.subr.mxu0 0.0
    %315 = vmatpush1.msra.mxu0 0.0
    %316 = vmatprep.subr.mxu0 0.0
    %317 = vmatpush1.msra.mxu0 0.0
    %318 = vmatprep.subr.mxu0 0.0
    %319 = vmatpush1.msra.mxu0 0.0
    %320 = vmatprep.subr.mxu0 0.0
    %321 = vmatpush1.msra.mxu0 0.0
    %322 = vmatprep.subr.mxu0 0.0
    %323 = vmatpush1.msra.mxu0 0.0
    %324 = vmatprep.mubr.f32.mxu0 0.0
    %325 = vmatmul.mubr.f32.gmra.mrb[0].mxu0 %v235
    %v326 = vpop.f32.mrb[0].mxu0
    %v327 = vadd.f32 %v258, %v326
    %v328 = vpop.f32.mrb[0].mxu0
    %329 = vmatprep.mubr.f32.mxu0 0.0
    %330 = vmatmul.mubr.f32.gmra.mrb[0].mxu0 %v236
    %v331 = vpop.f32.mrb[0].mxu0
    %v332 = vadd.f32 %v258, %v331
    %v333 = vpop.f32.mrb[0].mxu0
    %334 = vdwg.mxu0
    %v335 = vsub.f32 0.0, %v327
    %v336 = vsub.f32 0.0, %v332
    %v337 = vmul.f32 %v335, 1.442695
    %v338 = vpow.pop %v337
    %v339 = vmul.f32 %v336, 1.442695
    %v340 = vpow.pop %v339
    %v341 = vadd.f32 %v338, 1.0
    %v342 = vadd.f32 %v340, 1.0
    %v343 = vrcp.pop %v341
    %v344 = vrcp.pop %v342
    %vm345 = vcmask 64512
    %346 = vst.msk [vmem:[%s7] sm:$0xff] %vm345, %v343
    %347 = vst.msk [vmem:[%s7 + $0x8] sm:$0xff] %vm345, %v344
    // Predicated region
    $region34: #{tpu_custom_call.1} parent=1 // pred_check
      _
    $region35: #{tpu_custom_call.1} parent=1 // pred_check_branch
      %349 = sbr.rel (0) target = $region37
    $region36: #{tpu_custom_call.1} parent=1 // pred_region
      _
    $region37: #{tpu_custom_call.1} parent=1 // pred_fallthru
      _
    // Predicated region
    $region38: #{tpu_custom_call.1} parent=1 // pred_check
      _
    $region39: #{tpu_custom_call.1} parent=1 // pred_check_branch
      %351 = sbr.rel (0) target = $region41
    $region40: #{tpu_custom_call.1} parent=1 // pred_region
      _
    $region41: #{tpu_custom_call.1} parent=1 // pred_fallthru
      _
    %352 = vsyncpa [#allocation3], 1

</llo_original>
